<compile_context>
chip_gen: v6e
topology: v6e:2x2x1
jax: 0.10.0
libtpu: 0.0.40
codegen_flags: <defaults>
</compile_context>

<pallas_src>
import functools

import jax
import jax.numpy as jnp
from jax.experimental import pallas as pl
from jax.experimental.pallas import tpu as pltpu


# ---------------------------------------------------------------------------
# Kernels
# ---------------------------------------------------------------------------

def _make_unrolled_kernel(num_models):
    """Gridless chain: all M Linear+ReLU blocks in one kernel invocation."""

    def kernel(x_ref, w_ref, b_ref, out_ref):
        # Carried activation lives in values/vregs for the whole chain.
        h = x_ref[...].astype(jnp.float32)                      # (B, D) f32
        for m in range(num_models):                             # static unroll (M small)
            acc = jnp.dot(h.astype(jnp.bfloat16), w_ref[m],     # bf16 x bf16 -> f32 on MXU
                          preferred_element_type=jnp.float32)
            h = jnp.maximum(acc + b_ref[m], 0.0)                # f32 bias + ReLU (VPU)
            out_ref[m, :, :] = h                                # one lane-dense store per model

    return kernel


def _gridded_kernel(x_ref, w_ref, b_ref, out_ref, h_ref):
    """Grid over models: one Linear+ReLU per grid step, h carried in VMEM scratch."""
    m = pl.program_id(0)

    @pl.when(m == 0)
    def _():
        h_ref[...] = x_ref[...].astype(jnp.float32)

    acc = jnp.dot(h_ref[...].astype(jnp.bfloat16), w_ref[0],
                  preferred_element_type=jnp.float32)           # (B, D) f32
    h = jnp.maximum(acc + b_ref[0], 0.0)
    h_ref[...] = h                                              # carry to next model
    out_ref[0] = h                                              # this model's data_list entry


# ---------------------------------------------------------------------------
# Wrapper
# ---------------------------------------------------------------------------

def init_models_params(weights, biases):
    """One-time parameter prep: persist weights in bf16, biases as (M, 1, D) f32."""
    M, D, D2 = weights.shape
    assert D == D2 and biases.shape == (M, D)
    return {
        "w": jnp.asarray(weights, dtype=jnp.bfloat16),          # (M, D, D) bf16, persisted
        "b": jnp.asarray(biases, dtype=jnp.float32).reshape(M, 1, D),
    }


# Thresholds for picking the kernel form (unrolled vs gridded).
_MAX_UNROLL_MODELS = 4                       # beyond this the unroll starts spilling vregs
_MAX_UNROLL_WEIGHT_BYTES = 4 * 1024 * 1024   # keep the full-residency form well inside VMEM


def _models_forward_stacked(x, w_bf16, b_f32, use_grid):
    M, D, _ = w_bf16.shape
    B = x.shape[0]
    out_shape = jax.ShapeDtypeStruct((M, B, D), jnp.float32)
    cost = pl.CostEstimate(
        flops=2 * M * B * D * D,
        transcendentals=0,
        bytes_accessed=(M * D * D * 2            # bf16 weights in
                        + M * D * 4              # f32 biases in
                        + B * D * x.dtype.itemsize   # input in
                        + M * B * D * 4))        # stacked f32 output out

    if not use_grid:
        # Gridless, statically unrolled chain: whole weight stack resident in VMEM.
        vmem = pl.BlockSpec(memory_space=pltpu.MemorySpace.VMEM)
        return pl.pallas_call(
            _make_unrolled_kernel(M),
            out_shape=out_shape,
            in_specs=[vmem, vmem, vmem],
            out_specs=vmem,
            cost_estimate=cost,
        )(x, w_bf16, b_f32)

    # Gridded form: one model per grid step; weights double-buffered per model,
    # so VMEM use is independent of M (v7x-safe) and weight DMA overlaps compute.
    needed = (2 * D * D * 2          # double-buffered bf16 weight tile
              + 2 * 1 * D * 4        # double-buffered f32 bias row
              + B * D * x.dtype.itemsize
              + 2 * B * D * 4        # double-buffered output block
              + B * D * 4)           # h scratch
    vmem_limit = int(min(max(4 * needed, 16 * 1024 * 1024), 64 * 1024 * 1024))

    return pl.pallas_call(
        _gridded_kernel,
        out_shape=out_shape,
        grid_spec=pltpu.PrefetchScalarGridSpec(
            num_scalar_prefetch=0,
            grid=(M,),
            in_specs=[pl.BlockSpec((B, D), lambda m: (0, 0)),        # x stays resident
                      pl.BlockSpec((1, D, D), lambda m: (m, 0, 0)),  # weights of model m
                      pl.BlockSpec((1, 1, D), lambda m: (m, 0, 0))], # bias of model m
            out_specs=pl.BlockSpec((1, B, D), lambda m: (m, 0, 0)),
            scratch_shapes=[pltpu.VMEM((B, D), jnp.float32)]),
        compiler_params=pltpu.CompilerParams(
            dimension_semantics=("arbitrary",),      # chain is a sequential dependence
            vmem_limit_bytes=vmem_limit),
        cost_estimate=cost,
    )(x, w_bf16, b_f32)


@functools.partial(jax.jit, static_argnames=("use_grid",))
def _models_forward_jit(x, w_bf16, b_f32, use_grid):
    stacked = _models_forward_stacked(x, w_bf16, b_f32, use_grid)
    # Slice the stacked output back into the "data_list" inside the jit.
    return tuple(stacked[m] for m in range(w_bf16.shape[0]))


def models_forward(x, params, use_grid=None):
    """Pallas equivalent of Models([Linear+ReLU]*M).forward(x).

    Args:
      x:      (B, D) input (any float dtype; chain computes/returns f32)
      params: dict from init_models_params (bf16 weights, f32 biases)
      use_grid: force the gridded form (None = auto by size)
    Returns:
      list of M arrays, each (B, D) f32: [f0(x), f1(f0(x)), ...]
    """
    w_bf16, b_f32 = params["w"], params["b"]
    M, D, _ = w_bf16.shape
    if use_grid is None:
        use_grid = (M > _MAX_UNROLL_MODELS
                    or M * D * D * 2 > _MAX_UNROLL_WEIGHT_BYTES)
    return list(_models_forward_jit(x, w_bf16, b_f32, use_grid=use_grid))


# ---------------------------------------------------------------------------
# Pure-JAX reference with identical arithmetic (bf16 matmul inputs, f32 accum)
# ---------------------------------------------------------------------------

def _reference_forward(x, w_bf16, biases):
    data = jnp.asarray(x, dtype=jnp.float32)
    outs = []
    for m in range(w_bf16.shape[0]):
        acc = jnp.dot(data.astype(jnp.bfloat16), w_bf16[m],
                      preferred_element_type=jnp.float32)
        data = jnp.maximum(acc + biases[m].astype(jnp.float32), 0.0)
        outs.append(data)
    return outs


if __name__ == "__main__":
    # Small, deterministic setup: batch=8, hidden=128, 3 chained sub-models.
    B, D, M = 8, 128, 3

    key = jax.random.PRNGKey(0)
    kx, kw, kb = jax.random.split(key, 3)

    x = jax.random.normal(kx, (B, D), dtype=jnp.float32)
    weights = jax.random.normal(kw, (M, D, D), dtype=jnp.float32) * (1.0 / jnp.sqrt(D))
    biases = jax.random.normal(kb, (M, D), dtype=jnp.float32) * 0.1

    params = init_models_params(weights, biases)   # one-time bf16 persist
    refs = _reference_forward(x, params["w"], biases)

    # Default path at this shape: gridless, statically unrolled kernel.
    outs = models_forward(x, params)
    outs = [jax.block_until_ready(o) for o in outs]
    assert len(outs) == M
    for o, r in zip(outs, refs):
        assert o.shape == (B, D) and o.dtype == jnp.float32
        assert jnp.allclose(o, r, atol=2e-2, rtol=2e-2)

    # Scalable gridded path (forced) must produce identical semantics.
    outs_g = models_forward(x, params, use_grid=True)
    outs_g = [jax.block_until_ready(o) for o in outs_g]
    for o, r in zip(outs_g, refs):
        assert o.shape == (B, D) and o.dtype == jnp.float32
        assert jnp.allclose(o, r, atol=2e-2, rtol=2e-2)

    print("KERNEL_OK")
</pallas_src>

<mosaic_0001>
module attributes {stable_mosaic.version = 11 : i64} {
  func.func @kernel(%arg0: memref<8x128xf32, #tpu.memory_space<vmem>>, %arg1: memref<3x128x128xbf16, #tpu.memory_space<vmem>>, %arg2: memref<3x1x128xf32, #tpu.memory_space<vmem>>, %arg3: memref<3x8x128xf32, #tpu.memory_space<vmem>>) attributes {dimension_semantics = [], scalar_prefetch = 0 : i64, scratch_operands = 0 : i64, tpu.core_type = #tpu.core_type<tc>} {
    %c0 = arith.constant 0 : index
    %c0_0 = arith.constant 0 : index
    %0 = vector.load %arg0[%c0, %c0_0] : memref<8x128xf32, #tpu.memory_space<vmem>>, vector<8x128xf32>
    %1 = arith.truncf %0 : vector<8x128xf32> to vector<8x128xbf16>
    %c0_1 = arith.constant 0 : index
    %c0_2 = arith.constant 0 : index
    %c0_3 = arith.constant 0 : index
    %2 = vector.load %arg1[%c0_1, %c0_2, %c0_3] : memref<3x128x128xbf16, #tpu.memory_space<vmem>>, vector<1x128x128xbf16>
    %3 = vector.shape_cast %2 : vector<1x128x128xbf16> to vector<128x128xbf16>
    %cst = arith.constant dense<0.000000e+00> : vector<8x128xf32>
    %4 = tpu.matmul %1, %3, %cst {dimension_numbers = #tpu.dot_dimension_numbers<[1], [0], [0], [1], [0, 0, 1, 1], [], []>} : vector<8x128xbf16>, vector<128x128xbf16>, vector<8x128xf32> -> vector<8x128xf32>
    %c0_4 = arith.constant 0 : index
    %c0_5 = arith.constant 0 : index
    %c0_6 = arith.constant 0 : index
    %5 = vector.load %arg2[%c0_4, %c0_5, %c0_6] : memref<3x1x128xf32, #tpu.memory_space<vmem>>, vector<1x1x128xf32>
    %6 = vector.shape_cast %5 : vector<1x1x128xf32> to vector<1x128xf32>
    %7 = vector.broadcast %6 : vector<1x128xf32> to vector<8x128xf32>
    %8 = arith.addf %4, %7 : vector<8x128xf32>
    %cst_7 = arith.constant 0.000000e+00 : f32
    %9 = vector.broadcast %cst_7 : f32 to vector<8x128xf32>
    %10 = arith.maximumf %8, %9 : vector<8x128xf32>
    %c0_8 = arith.constant 0 : index
    %c0_9 = arith.constant 0 : index
    %c0_10 = arith.constant 0 : index
    %11 = vector.load %arg3[%c0_8, %c0_9, %c0_10] : memref<3x8x128xf32, #tpu.memory_space<vmem>>, vector<1x8x128xf32>
    %12 = vector.shape_cast %11 : vector<1x8x128xf32> to vector<8x128xf32>
    %13 = vector.shape_cast %10 : vector<8x128xf32> to vector<1x8x128xf32>
    tpu.vector_store %arg3[%c0_8, %c0_9, %c0_10], %13 {strides = array<i32>} : memref<3x8x128xf32, #tpu.memory_space<vmem>>, vector<1x8x128xf32>,
    %14 = arith.truncf %10 : vector<8x128xf32> to vector<8x128xbf16>
    %c1 = arith.constant 1 : index
    %c0_11 = arith.constant 0 : index
    %c0_12 = arith.constant 0 : index
    %15 = vector.load %arg1[%c1, %c0_11, %c0_12] : memref<3x128x128xbf16, #tpu.memory_space<vmem>>, vector<1x128x128xbf16>
    %16 = vector.shape_cast %15 : vector<1x128x128xbf16> to vector<128x128xbf16>
    %cst_13 = arith.constant dense<0.000000e+00> : vector<8x128xf32>
    %17 = tpu.matmul %14, %16, %cst_13 {dimension_numbers = #tpu.dot_dimension_numbers<[1], [0], [0], [1], [0, 0, 1, 1], [], []>} : vector<8x128xbf16>, vector<128x128xbf16>, vector<8x128xf32> -> vector<8x128xf32>
    %c1_14 = arith.constant 1 : index
    %c0_15 = arith.constant 0 : index
    %c0_16 = arith.constant 0 : index
    %18 = vector.load %arg2[%c1_14, %c0_15, %c0_16] : memref<3x1x128xf32, #tpu.memory_space<vmem>>, vector<1x1x128xf32>
    %19 = vector.shape_cast %18 : vector<1x1x128xf32> to vector<1x128xf32>
    %20 = vector.broadcast %19 : vector<1x128xf32> to vector<8x128xf32>
    %21 = arith.addf %17, %20 : vector<8x128xf32>
    %cst_17 = arith.constant 0.000000e+00 : f32
    %22 = vector.broadcast %cst_17 : f32 to vector<8x128xf32>
    %23 = arith.maximumf %21, %22 : vector<8x128xf32>
    %c1_18 = arith.constant 1 : index
    %c0_19 = arith.constant 0 : index
    %c0_20 = arith.constant 0 : index
    %24 = vector.load %arg3[%c1_18, %c0_19, %c0_20] : memref<3x8x128xf32, #tpu.memory_space<vmem>>, vector<1x8x128xf32>
    %25 = vector.shape_cast %24 : vector<1x8x128xf32> to vector<8x128xf32>
    %26 = vector.shape_cast %23 : vector<8x128xf32> to vector<1x8x128xf32>
    tpu.vector_store %arg3[%c1_18, %c0_19, %c0_20], %26 {strides = array<i32>} : memref<3x8x128xf32, #tpu.memory_space<vmem>>, vector<1x8x128xf32>,
    %27 = arith.truncf %23 : vector<8x128xf32> to vector<8x128xbf16>
    %c2 = arith.constant 2 : index
    %c0_21 = arith.constant 0 : index
    %c0_22 = arith.constant 0 : index
    %28 = vector.load %arg1[%c2, %c0_21, %c0_22] : memref<3x128x128xbf16, #tpu.memory_space<vmem>>, vector<1x128x128xbf16>
    %29 = vector.shape_cast %28 : vector<1x128x128xbf16> to vector<128x128xbf16>
    %cst_23 = arith.constant dense<0.000000e+00> : vector<8x128xf32>
    %30 = tpu.matmul %27, %29, %cst_23 {dimension_numbers = #tpu.dot_dimension_numbers<[1], [0], [0], [1], [0, 0, 1, 1], [], []>} : vector<8x128xbf16>, vector<128x128xbf16>, vector<8x128xf32> -> vector<8x128xf32>
    %c2_24 = arith.constant 2 : index
    %c0_25 = arith.constant 0 : index
    %c0_26 = arith.constant 0 : index
    %31 = vector.load %arg2[%c2_24, %c0_25, %c0_26] : memref<3x1x128xf32, #tpu.memory_space<vmem>>, vector<1x1x128xf32>
    %32 = vector.shape_cast %31 : vector<1x1x128xf32> to vector<1x128xf32>
    %33 = vector.broadcast %32 : vector<1x128xf32> to vector<8x128xf32>
    %34 = arith.addf %30, %33 : vector<8x128xf32>
    %cst_27 = arith.constant 0.000000e+00 : f32
    %35 = vector.broadcast %cst_27 : f32 to vector<8x128xf32>
    %36 = arith.maximumf %34, %35 : vector<8x128xf32>
    %c2_28 = arith.constant 2 : index
    %c0_29 = arith.constant 0 : index
    %c0_30 = arith.constant 0 : index
    %37 = vector.load %arg3[%c2_28, %c0_29, %c0_30] : memref<3x8x128xf32, #tpu.memory_space<vmem>>, vector<1x8x128xf32>
    %38 = vector.shape_cast %37 : vector<1x8x128xf32> to vector<8x128xf32>
    %39 = vector.shape_cast %36 : vector<8x128xf32> to vector<1x8x128xf32>
    tpu.vector_store %arg3[%c2_28, %c0_29, %c0_30], %39 {strides = array<i32>} : memref<3x8x128xf32, #tpu.memory_space<vmem>>, vector<1x8x128xf32>,
    return
  }
}

</mosaic_0001>

<llo_original>
// kernel: _models_forward_jit.1
$region0: #{_models_forward_jit.1}
  #allocation0 [shape = 'u32[]', space=smem, size = 0x4, offset = 0x4, fixed_abs, tag = 'smem constant byte address 0x4 - core index']
  #allocation1 [shape = 'u32[144,128]{1,0:T(1,128)}', space=vmem, size = 0x12000, scoped, tag = 'internal scratch']
  %s0 = inlined_call_operand.hbm [shape: f32[8,128], index: 0, kind: input, shape index: {}]
  %s1 = inlined_call_operand.hbm [shape: bf16[3,128,128], index: 1, kind: input, shape index: {}]
  %s2 = inlined_call_operand.vmem [shape: f32[3,1,128], index: 2, kind: input, shape index: {}]
  %s3 = inlined_call_operand.vmem [shape: f32[3,8,128], index: 3, kind: output, shape index: {}]
  %s4 = sld [smem:[#allocation0]]
  $region30: #{_models_forward_jit.1} parent=0
    _
  %s6 = ssub.s32 1, %s4
  %s7 = scalar_select 0, %s6, %s4
  $region1: #{_models_forward_jit.1} parent=0
    #allocation2 [shape = 'u8[4096]{0}', space=vmem, size = 0x1000, scoped, tag = 'input window, operand 0, single buffered']
    #allocation3 [shape = 's32[1]{0}', space=sflag, size = 0x4, scoped, tag = 'scoped memory for _models_forward_jit.1']
    #allocation4 [shape = 'u8[98304]{0}', space=vmem, size = 0x18000, scoped, tag = 'input window, operand 1, single buffered']
    #allocation5 [shape = 's32[1]{0}', space=sflag, size = 0x4, scoped, tag = 'scoped memory for _models_forward_jit.1']
    %8 = vsyncpa [#allocation3], 0
    %9 = vsyncpa [#allocation5], 0
    // Predicated region
    $region2: #{_models_forward_jit.1} parent=1 // pred_check
      _
    $region3: #{_models_forward_jit.1} parent=1 // pred_check_branch
      %11 = sbr.rel (0) target = $region5
    $region4: #{_models_forward_jit.1} parent=1 // pred_region
      %s13 = ssub.s32 128, 128
      %14 = vsyncadd [#allocation3], %s13
      %s16 = sshll.u32 [#allocation2], 4
      %s17 = int_to_ptr.vmem [resolvable:$true] %s16
      %19 = dma.hbm_to_vmem [thread:$0]  %s0, 128, %s17, [#allocation3]
    $region5: #{_models_forward_jit.1} parent=1 // pred_fallthru
      _
    // Predicated region
    $region6: #{_models_forward_jit.1} parent=1 // pred_check
      _
    $region7: #{_models_forward_jit.1} parent=1 // pred_check_branch
      %21 = sbr.rel (0) target = $region9
    $region8: #{_models_forward_jit.1} parent=1 // pred_region
      %s23 = ssub.s32 3072, 3072
      %24 = vsyncadd [#allocation5], %s23
      %s25 = sshll.u32 [#allocation4], 4
      %s26 = int_to_ptr.vmem [resolvable:$true] %s25
      %31 = dma.hbm_to_vmem [thread:$0]  %s1, 3072, %s26, [#allocation5], 64, 64, 4
    $region9: #{_models_forward_jit.1} parent=1 // pred_fallthru
      _
    // Predicated region
    $region10: #{_models_forward_jit.1} parent=1 // pred_check
      _
    $region11: #{_models_forward_jit.1} parent=1 // pred_check_branch
      %33 = sbr.rel (0) target = $region13
    $region12: #{_models_forward_jit.1} parent=1 // pred_region
      _
    $region13: #{_models_forward_jit.1} parent=1 // pred_fallthru
      _
    // Predicated region
    $region14: #{_models_forward_jit.1} parent=1 // pred_check
      _
    $region15: #{_models_forward_jit.1} parent=1 // pred_check_branch
      %35 = sbr.rel (0) target = $region17
    $region16: #{_models_forward_jit.1} parent=1 // pred_region
      %36 = dma.done [#allocation3], 128
    $region17: #{_models_forward_jit.1} parent=1 // pred_fallthru
      _
    // Predicated region
    $region18: #{_models_forward_jit.1} parent=1 // pred_check
      _
    $region19: #{_models_forward_jit.1} parent=1 // pred_check_branch
      %38 = sbr.rel (0) target = $region21
    $region20: #{_models_forward_jit.1} parent=1 // pred_region
      %39 = dma.done [#allocation5], 3072
    $region21: #{_models_forward_jit.1} parent=1 // pred_fallthru
      _
    %v41 = vld [vmem:[#allocation2] sm:$0xff]
    %v42 = vpack.c.bf16 %v41, %v41
    %v43 = vld [vmem:[#allocation4] sm:$0xf]
    %v44 = vld [vmem:[#allocation4 + $0x4] sm:$0xf]
    %v45 = vld [vmem:[#allocation4 + $0x8] sm:$0xf]
    %v46 = vld [vmem:[#allocation4 + $0xc] sm:$0xf]
    %v47 = vld [vmem:[#allocation4 + $0x10] sm:$0xf]
    %v48 = vld [vmem:[#allocation4 + $0x14] sm:$0xf]
    %v49 = vld [vmem:[#allocation4 + $0x18] sm:$0xf]
    %v50 = vld [vmem:[#allocation4 + $0x1c] sm:$0xf]
    %v51 = vld [vmem:[#allocation4 + $0x20] sm:$0xf]
    %v52 = vld [vmem:[#allocation4 + $0x24] sm:$0xf]
    %v53 = vld [vmem:[#allocation4 + $0x28] sm:$0xf]
    %v54 = vld [vmem:[#allocation4 + $0x2c] sm:$0xf]
    %v55 = vld [vmem:[#allocation4 + $0x30] sm:$0xf]
    %v56 = vld [vmem:[#allocation4 + $0x34] sm:$0xf]
    %v57 = vld [vmem:[#allocation4 + $0x38] sm:$0xf]
    %v58 = vld [vmem:[#allocation4 + $0x3c] sm:$0xf]
    %v59 = vld [vmem:[%s2] sm:$0x1]
    %v61 = vlaneseq
    %v62 = vshrl.u32 %v61, 7
    %v63 = vsub.s32 0, %v62
    %v64 = vrot.slane %v59, %v63
    %v82 = vunpack.c.l.b16 %v43
    %v83 = vunpack.c.l.b16 %v44
    %v84 = vunpack.c.l.b16 %v45
    %v85 = vunpack.c.l.b16 %v46
    %v86 = vunpack.c.l.b16 %v47
    %v87 = vunpack.c.l.b16 %v48
    %v88 = vunpack.c.l.b16 %v49
    %v89 = vunpack.c.l.b16 %v50
    %v90 = vunpack.c.l.b16 %v51
    %v91 = vunpack.c.l.b16 %v52
    %v92 = vunpack.c.l.b16 %v53
    %v93 = vunpack.c.l.b16 %v54
    %v94 = vunpack.c.l.b16 %v55
    %v95 = vunpack.c.l.b16 %v56
    %v96 = vunpack.c.l.b16 %v57
    %v97 = vunpack.c.l.b16 %v58
    %v98 = vpack.c.b16 %v83, %v82
    %v99 = vpack.c.b16 %v85, %v84
    %v100 = vpack.c.b16 %v87, %v86
    %v101 = vpack.c.b16 %v89, %v88
    %v102 = vpack.c.b16 %v91, %v90
    %v103 = vpack.c.b16 %v93, %v92
    %v104 = vpack.c.b16 %v95, %v94
    %v105 = vpack.c.b16 %v97, %v96
    %114 = vmatprep.subr.bf16.mxu0 0
    %115 = vmatpush1.bf16.msra.mxu0 %v105
    %116 = vmatprep.subr.bf16.mxu0 0
    %117 = vmatpush1.bf16.msra.mxu0 %v104
    %118 = vmatprep.subr.bf16.mxu0 0
    %119 = vmatpush1.bf16.msra.mxu0 %v103
    %120 = vmatprep.subr.bf16.mxu0 0
    %121 = vmatpush1.bf16.msra.mxu0 %v102
    %122 = vmatprep.subr.bf16.mxu0 0
    %123 = vmatpush1.bf16.msra.mxu0 %v101
    %124 = vmatprep.subr.bf16.mxu0 0
    %125 = vmatpush1.bf16.msra.mxu0 %v100
    %126 = vmatprep.subr.bf16.mxu0 0
    %127 = vmatpush1.bf16.msra.mxu0 %v99
    %128 = vmatprep.subr.bf16.mxu0 0
    %129 = vmatpush1.bf16.msra.mxu0 %v98
    %130 = vmatprep.subr.bf16.mxu0 0
    %131 = vmatpush2.bf16.msra.mxu0 0
    %132 = vmatprep.subr.bf16.mxu0 0
    %133 = vmatpush2.bf16.msra.mxu0 0
    %134 = vmatprep.subr.bf16.mxu0 0
    %135 = vmatpush2.bf16.msra.mxu0 0
    %136 = vmatprep.subr.bf16.mxu0 0
    %137 = vmatpush2.bf16.msra.mxu0 0
    %138 = vmatprep.subr.bf16.mxu0 0
    %139 = vmatpush2.bf16.msra.mxu0 0
    %140 = vmatprep.subr.bf16.mxu0 0
    %141 = vmatpush2.bf16.msra.mxu0 0
    %142 = vmatprep.subr.bf16.mxu0 0
    %143 = vmatpush2.bf16.msra.mxu0 0
    %144 = vmatprep.subr.bf16.mxu0 0
    %145 = vmatpush2.bf16.msra.mxu0 0
    %146 = vmatprep.mubr.bf16.mxu0 0
    %147 = vmatmul.mubr.bf16.gmra.mxu0 %v42
    %v148 = vpop.f32.mrf.mxu0
    %v149 = vadd.f32 %v64, %v148
    %v150 = vpop.f32.mrf.mxu0
    %v151 = vpop.f32.mrf.mxu0
    %v152 = vpop.f32.mrf.mxu0
    %153 = vdwg.mxu0
    %v154 = vmax.f32 %v149, 0.0
    %155 = vst [vmem:[%s3] sm:$0xff] %v154
    %v156 = vpack.c.bf16 %v154, %v154
    %s157 = scalar_lea.vmem [#allocation4], 64
    %v158 = vld [vmem:[%s157] sm:$0xf]
    %v159 = vld [vmem:[%s157 + $0x4] sm:$0xf]
    %v160 = vld [vmem:[%s157 + $0x8] sm:$0xf]
    %v161 = vld [vmem:[%s157 + $0xc] sm:$0xf]
    %v162 = vld [vmem:[%s157 + $0x10] sm:$0xf]
    %v163 = vld [vmem:[%s157 + $0x14] sm:$0xf]
    %v164 = vld [vmem:[%s157 + $0x18] sm:$0xf]
    %v165 = vld [vmem:[%s157 + $0x1c] sm:$0xf]
    %v166 = vld [vmem:[%s157 + $0x20] sm:$0xf]
    %v167 = vld [vmem:[%s157 + $0x24] sm:$0xf]
    %v168 = vld [vmem:[%s157 + $0x28] sm:$0xf]
    %v169 = vld [vmem:[%s157 + $0x2c] sm:$0xf]
    %v170 = vld [vmem:[%s157 + $0x30] sm:$0xf]
    %v171 = vld [vmem:[%s157 + $0x34] sm:$0xf]
    %v172 = vld [vmem:[%s157 + $0x38] sm:$0xf]
    %v173 = vld [vmem:[%s157 + $0x3c] sm:$0xf]
    %s174 = scalar_lea.vmem %s2, 1
    %v175 = vld [vmem:[%s174] sm:$0x1]
    %v177 = vlaneseq
    %v178 = vshrl.u32 %v177, 7
    %v179 = vsub.s32 0, %v178
    %v180 = vrot.slane %v175, %v179
    %v198 = vunpack.c.l.b16 %v158
    %v199 = vunpack.c.l.b16 %v159
    %v200 = vunpack.c.l.b16 %v160
    %v201 = vunpack.c.l.b16 %v161
    %v202 = vunpack.c.l.b16 %v162
    %v203 = vunpack.c.l.b16 %v163
    %v204 = vunpack.c.l.b16 %v164
    %v205 = vunpack.c.l.b16 %v165
    %v206 = vunpack.c.l.b16 %v166
    %v207 = vunpack.c.l.b16 %v167
    %v208 = vunpack.c.l.b16 %v168
    %v209 = vunpack.c.l.b16 %v169
    %v210 = vunpack.c.l.b16 %v170
    %v211 = vunpack.c.l.b16 %v171
    %v212 = vunpack.c.l.b16 %v172
    %v213 = vunpack.c.l.b16 %v173
    %v214 = vpack.c.b16 %v199, %v198
    %v215 = vpack.c.b16 %v201, %v200
    %v216 = vpack.c.b16 %v203, %v202
    %v217 = vpack.c.b16 %v205, %v204
    %v218 = vpack.c.b16 %v207, %v206
    %v219 = vpack.c.b16 %v209, %v208
    %v220 = vpack.c.b16 %v211, %v210
    %v221 = vpack.c.b16 %v213, %v212
    %230 = vmatprep.subr.bf16.mxu0 0
    %231 = vmatpush1.bf16.msra.mxu0 %v221
    %232 = vmatprep.subr.bf16.mxu0 0
    %233 = vmatpush1.bf16.msra.mxu0 %v220
    %234 = vmatprep.subr.bf16.mxu0 0
    %235 = vmatpush1.bf16.msra.mxu0 %v219
    %236 = vmatprep.subr.bf16.mxu0 0
    %237 = vmatpush1.bf16.msra.mxu0 %v218
    %238 = vmatprep.subr.bf16.mxu0 0
    %239 = vmatpush1.bf16.msra.mxu0 %v217
    %240 = vmatprep.subr.bf16.mxu0 0
    %241 = vmatpush1.bf16.msra.mxu0 %v216
    %242 = vmatprep.subr.bf16.mxu0 0
    %243 = vmatpush1.bf16.msra.mxu0 %v215
    %244 = vmatprep.subr.bf16.mxu0 0
    %245 = vmatpush1.bf16.msra.mxu0 %v214
    %246 = vmatprep.subr.bf16.mxu0 0
    %247 = vmatpush2.bf16.msra.mxu0 0
    %248 = vmatprep.subr.bf16.mxu0 0
    %249 = vmatpush2.bf16.msra.mxu0 0
    %250 = vmatprep.subr.bf16.mxu0 0
    %251 = vmatpush2.bf16.msra.mxu0 0
    %252 = vmatprep.subr.bf16.mxu0 0
    %253 = vmatpush2.bf16.msra.mxu0 0
    %254 = vmatprep.subr.bf16.mxu0 0
    %255 = vmatpush2.bf16.msra.mxu0 0
    %256 = vmatprep.subr.bf16.mxu0 0
    %257 = vmatpush2.bf16.msra.mxu0 0
    %258 = vmatprep.subr.bf16.mxu0 0
    %259 = vmatpush2.bf16.msra.mxu0 0
    %260 = vmatprep.subr.bf16.mxu0 0
    %261 = vmatpush2.bf16.msra.mxu0 0
    %262 = vmatprep.mubr.bf16.mxu0 0
    %263 = vmatmul.mubr.bf16.gmra.mxu0 %v156
    %v264 = vpop.f32.mrf.mxu0
    %v265 = vadd.f32 %v180, %v264
    %v266 = vpop.f32.mrf.mxu0
    %v267 = vpop.f32.mrf.mxu0
    %v268 = vpop.f32.mrf.mxu0
    %269 = vdwg.mxu0
    %v270 = vmax.f32 %v265, 0.0
    %s271 = scalar_lea.vmem %s3, 8
    %272 = vst [vmem:[%s271] sm:$0xff] %v270
    %v273 = vpack.c.bf16 %v270, %v270
    %s274 = scalar_lea.vmem [#allocation4], 128
    %v275 = vld [vmem:[%s274] sm:$0xf]
    %v276 = vld [vmem:[%s274 + $0x4] sm:$0xf]
    %v277 = vld [vmem:[%s274 + $0x8] sm:$0xf]
    %v278 = vld [vmem:[%s274 + $0xc] sm:$0xf]
    %v279 = vld [vmem:[%s274 + $0x10] sm:$0xf]
    %v280 = vld [vmem:[%s274 + $0x14] sm:$0xf]
    %v281 = vld [vmem:[%s274 + $0x18] sm:$0xf]
    %v282 = vld [vmem:[%s274 + $0x1c] sm:$0xf]
    %v283 = vld [vmem:[%s274 + $0x20] sm:$0xf]
    %v284 = vld [vmem:[%s274 + $0x24] sm:$0xf]
    %v285 = vld [vmem:[%s274 + $0x28] sm:$0xf]
    %v286 = vld [vmem:[%s274 + $0x2c] sm:$0xf]
    %v287 = vld [vmem:[%s274 + $0x30] sm:$0xf]
    %v288 = vld [vmem:[%s274 + $0x34] sm:$0xf]
    %v289 = vld [vmem:[%s274 + $0x38] sm:$0xf]
    %v290 = vld [vmem:[%s274 + $0x3c] sm:$0xf]
    %s291 = scalar_lea.vmem %s2, 2
    %v292 = vld [vmem:[%s291] sm:$0x1]
    %v294 = vlaneseq
    %v295 = vshrl.u32 %v294, 7
    %v296 = vsub.s32 0, %v295
    %v297 = vrot.slane %v292, %v296
    %v315 = vunpack.c.l.b16 %v275
    %v316 = vunpack.c.l.b16 %v276
    %v317 = vunpack.c.l.b16 %v277
    %v318 = vunpack.c.l.b16 %v278
    %v319 = vunpack.c.l.b16 %v279
    %v320 = vunpack.c.l.b16 %v280
    %v321 = vunpack.c.l.b16 %v281
    %v322 = vunpack.c.l.b16 %v282
    %v323 = vunpack.c.l.b16 %v283
    %v324 = vunpack.c.l.b16 %v284
    %v325 = vunpack.c.l.b16 %v285
    %v326 = vunpack.c.l.b16 %v286
    %v327 = vunpack.c.l.b16 %v287
    %v328 = vunpack.c.l.b16 %v288
    %v329 = vunpack.c.l.b16 %v289
    %v330 = vunpack.c.l.b16 %v290
    %v331 = vpack.c.b16 %v316, %v315
    %v332 = vpack.c.b16 %v318, %v317
    %v333 = vpack.c.b16 %v320, %v319
    %v334 = vpack.c.b16 %v322, %v321
    %v335 = vpack.c.b16 %v324, %v323
    %v336 = vpack.c.b16 %v326, %v325
    %v337 = vpack.c.b16 %v328, %v327
    %v338 = vpack.c.b16 %v330, %v329
    %347 = vmatprep.subr.bf16.mxu0 0
    %348 = vmatpush1.bf16.msra.mxu0 %v338
    %349 = vmatprep.subr.bf16.mxu0 0
    %350 = vmatpush1.bf16.msra.mxu0 %v337
    %351 = vmatprep.subr.bf16.mxu0 0
    %352 = vmatpush1.bf16.msra.mxu0 %v336
    %353 = vmatprep.subr.bf16.mxu0 0
    %354 = vmatpush1.bf16.msra.mxu0 %v335
    %355 = vmatprep.subr.bf16.mxu0 0
    %356 = vmatpush1.bf16.msra.mxu0 %v334
    %357 = vmatprep.subr.bf16.mxu0 0
    %358 = vmatpush1.bf16.msra.mxu0 %v333
    %359 = vmatprep.subr.bf16.mxu0 0
    %360 = vmatpush1.bf16.msra.mxu0 %v332
    %361 = vmatprep.subr.bf16.mxu0 0
    %362 = vmatpush1.bf16.msra.mxu0 %v331
    %363 = vmatprep.subr.bf16.mxu0 0
    %364 = vmatpush2.bf16.msra.mxu0 0
    %365 = vmatprep.subr.bf16.mxu0 0
    %366 = vmatpush2.bf16.msra.mxu0 0
    %367 = vmatprep.subr.bf16.mxu0 0
    %368 = vmatpush2.bf16.msra.mxu0 0
    %369 = vmatprep.subr.bf16.mxu0 0
    %370 = vmatpush2.bf16.msra.mxu0 0
    %371 = vmatprep.subr.bf16.mxu0 0
    %372 = vmatpush2.bf16.msra.mxu0 0
    %373 = vmatprep.subr.bf16.mxu0 0
    %374 = vmatpush2.bf16.msra.mxu0 0
    %375 = vmatprep.subr.bf16.mxu0 0
    %376 = vmatpush2.bf16.msra.mxu0 0
    %377 = vmatprep.subr.bf16.mxu0 0
    %378 = vmatpush2.bf16.msra.mxu0 0
    %379 = vmatprep.mubr.bf16.mxu0 0
    %380 = vmatmul.mubr.bf16.gmra.mxu0 %v273
    %v381 = vpop.f32.mrf.mxu0
    %v382 = vadd.f32 %v297, %v381
    %v383 = vpop.f32.mrf.mxu0
    %v384 = vpop.f32.mrf.mxu0
    %v385 = vpop.f32.mrf.mxu0
    %386 = vdwg.mxu0
    %v387 = vmax.f32 %v382, 0.0
    %s388 = scalar_lea.vmem %s3, 16
    %389 = vst [vmem:[%s388] sm:$0xff] %v387
    // Predicated region
    $region22: #{_models_forward_jit.1} parent=1 // pred_check
      _
    $region23: #{_models_forward_jit.1} parent=1 // pred_check_branch
      %391 = sbr.rel (0) target = $region25
    $region24: #{_models_forward_jit.1} parent=1 // pred_region
      _
    $region25: #{_models_forward_jit.1} parent=1 // pred_fallthru
      _
    // Predicated region
    $region26: #{_models_forward_jit.1} parent=1 // pred_check
      _
    $region27: #{_models_forward_jit.1} parent=1 // pred_check_branch
      %393 = sbr.rel (0) target = $region29
    $region28: #{_models_forward_jit.1} parent=1 // pred_region
      _
    $region29: #{_models_forward_jit.1} parent=1 // pred_fallthru
      _
    %394 = vsyncpa [#allocation3], 1
    %395 = vsyncpa [#allocation5], 1

</llo_original>
